<compile_context>
chip_gen: v7x
topology: tpu7x:2x2x1
jax: 0.10.0
libtpu: 0.0.40
codegen_flags: <defaults>
</compile_context>

<pallas_src>
import jax
import jax.numpy as jnp
from jax.experimental import pallas as pl
from jax.experimental.pallas import tpu as pltpu


def _conv1x1_kernel(w_ref, x_ref, o_ref):
    # w_ref: (tco, Cin)  bf16  -- one Cout tile of the weight matrix
    # x_ref: (Cin, HW)   bf16  -- one batch element's activations (NCHW view)
    # o_ref: (tco, HW)   f32   -- corresponding output tile
    o_ref[...] = jnp.dot(
        w_ref[...], x_ref[...], preferred_element_type=jnp.float32
    ).astype(o_ref.dtype)


def conv2d_1x1(x_nchw, w_oihw, *, tco=40):
    """1x1 conv, stride 1, no bias. x_nchw: (N, Cin, H, W), w_oihw: (Cout, Cin, 1, 1)."""
    N, Cin, H, W = x_nchw.shape
    Cout = w_oihw.shape[0]
    HW = H * W
    assert Cout % tco == 0 and tco % 8 == 0, "pick tco as a multiple of 8 dividing Cout"

    out_dtype = x_nchw.dtype

    # Zero-copy reshapes, then cast inputs to bf16 (f32 accumulation in the kernel).
    x_b = x_nchw.reshape(N, Cin, HW).astype(jnp.bfloat16)   # (N, Cin, HW)
    w_mat = w_oihw.reshape(Cout, Cin).astype(jnp.bfloat16)  # (Cout, Cin)

    flops = 2 * N * Cout * Cin * HW
    bytes_accessed = (
        (w_mat.size + x_b.size) * 2                      # bf16 inputs
        + N * Cout * HW * jnp.dtype(out_dtype).itemsize  # f32 output
    )

    out = pl.pallas_call(
        _conv1x1_kernel,
        out_shape=jax.ShapeDtypeStruct((N, Cout, HW), out_dtype),
        grid_spec=pltpu.PrefetchScalarGridSpec(
            num_scalar_prefetch=0,
            grid=(N, Cout // tco),
            in_specs=[
                # Weight tile per Cout step; Cin is the full dim (exempt from 128 rule).
                pl.BlockSpec((tco, Cin), lambda n, j: (j, 0)),
                # Activation slab: constant in j -> fetched once per batch element,
                # stays resident across all Cout tiles.
                pl.BlockSpec((pl.Squeezed(), Cin, HW), lambda n, j: (n, 0, 0)),
            ],
            out_specs=pl.BlockSpec((pl.Squeezed(), tco, HW), lambda n, j: (n, j, 0)),
        ),
        compiler_params=pltpu.CompilerParams(
            # Cout tiles are independent -> shard across v7x TensorCores.
            dimension_semantics=("parallel", "parallel"),
        ),
        cost_estimate=pl.CostEstimate(
            flops=flops, transcendentals=0, bytes_accessed=bytes_accessed
        ),
    )(w_mat, x_b)

    # (N, Cout, H*W) -> (N, Cout, H, W): pure reshape, no transpose.
    return out.reshape(N, Cout, H, W)


if __name__ == "__main__":
    key = jax.random.PRNGKey(0)
    kx, kw = jax.random.split(key)

    # Shapes implied by the module's forward: x460 = randn(1, 1200, 14, 14)
    N, Cin, H, W = 1, 1200, 14, 14
    Cout = 200

    x = jax.random.normal(kx, (N, Cin, H, W), dtype=jnp.float32)
    # Deterministic weight init (kaiming-uniform-like scale for a 1x1 conv)
    bound = (1.0 / Cin) ** 0.5
    w = jax.random.uniform(
        kw, (Cout, Cin, 1, 1), dtype=jnp.float32, minval=-bound, maxval=bound
    )

    out = conv2d_1x1(x, w)
    out = jax.block_until_ready(out)

    # Reference checks.
    w_mat = w.reshape(Cout, Cin)
    # Tight check against a bf16-input / f32-accumulate reference (same numerics).
    ref_bf16 = jnp.einsum(
        "nchw,oc->nohw",
        x.astype(jnp.bfloat16).astype(jnp.float32),
        w_mat.astype(jnp.bfloat16).astype(jnp.float32),
    )
    # Loose check against the full-f32 PyTorch-equivalent conv (bf16 input cast
    # changes numerics, so tolerance is relaxed vs. the original 2e-4).
    ref_f32 = jnp.einsum("nchw,oc->nohw", x, w_mat)

    assert out.shape == (N, Cout, H, W)
    assert out.dtype == x.dtype
    assert jnp.allclose(out, ref_bf16, atol=1e-3, rtol=1e-3)
    assert jnp.allclose(out, ref_f32, atol=5e-2, rtol=5e-2)

    print("KERNEL_OK")
</pallas_src>

<mosaic_0001>
module attributes {stable_mosaic.version = 11 : i64} {
  func.func @_conv1x1_kernel(%arg0: i32, %arg1: i32, %arg2: memref<40x1200xbf16, #tpu.memory_space<vmem>>, %arg3: memref<1x1200x196xbf16, #tpu.memory_space<vmem>>, %arg4: memref<1x40x196xf32, #tpu.memory_space<vmem>>) attributes {dimension_semantics = [#tpu.dimension_semantics<parallel>, #tpu.dimension_semantics<parallel>], iteration_bounds = array<i64: 1, 5>, scalar_prefetch = 0 : i64, scratch_operands = 0 : i64, tpu.core_type = #tpu.core_type<tc>, window_params = [{transform_indices = @transform_0, window_bounds = array<i64: 40, 1200>}, {transform_indices = @transform_1, window_bounds = array<i64: 1, 1200, 196>}, {transform_indices = @transform_2, window_bounds = array<i64: 1, 40, 196>}]} {
    %c0 = arith.constant 0 : index
    %c0_0 = arith.constant 0 : index
    %0 = vector.load %arg2[%c0, %c0_0] : memref<40x1200xbf16, #tpu.memory_space<vmem>>, vector<40x1200xbf16>
    %c0_1 = arith.constant 0 : index
    %c0_2 = arith.constant 0 : index
    %c0_3 = arith.constant 0 : index
    %1 = vector.load %arg3[%c0_1, %c0_2, %c0_3] : memref<1x1200x196xbf16, #tpu.memory_space<vmem>>, vector<1x1200x196xbf16>
    %2 = vector.shape_cast %1 : vector<1x1200x196xbf16> to vector<1200x196xbf16>
    %cst = arith.constant dense<0.000000e+00> : vector<40x196xf32>
    %3 = tpu.matmul %0, %2, %cst {dimension_numbers = #tpu.dot_dimension_numbers<[1], [0], [0], [1], [0, 0, 1, 1], [], []>} : vector<40x1200xbf16>, vector<1200x196xbf16>, vector<40x196xf32> -> vector<40x196xf32>
    %c0_4 = arith.constant 0 : index
    %c0_5 = arith.constant 0 : index
    %c0_6 = arith.constant 0 : index
    %4 = vector.load %arg4[%c0_4, %c0_5, %c0_6] : memref<1x40x196xf32, #tpu.memory_space<vmem>>, vector<1x40x196xf32>
    %5 = vector.shape_cast %4 : vector<1x40x196xf32> to vector<40x196xf32>
    %6 = vector.shape_cast %3 : vector<40x196xf32> to vector<1x40x196xf32>
    tpu.vector_store %arg4[%c0_4, %c0_5, %c0_6], %6 {strides = array<i32>} : memref<1x40x196xf32, #tpu.memory_space<vmem>>, vector<1x40x196xf32>,
    return
  }
  func.func @transform_0(%arg0: i32, %arg1: i32) -> (i32, i32) {
    %c0_i32 = arith.constant 0 : i32
    %c0_i32_0 = arith.constant 0 : i32
    return %arg1, %c0_i32 : i32, i32
  }
  func.func @transform_1(%arg0: i32, %arg1: i32) -> (i32, i32, i32) {
    %c0_i32 = arith.constant 0 : i32
    %c0_i32_0 = arith.constant 0 : i32
    %c0_i32_1 = arith.constant 0 : i32
    return %arg0, %c0_i32, %c0_i32_0 : i32, i32, i32
  }
  func.func @transform_2(%arg0: i32, %arg1: i32) -> (i32, i32, i32) {
    %c0_i32 = arith.constant 0 : i32
    %c0_i32_0 = arith.constant 0 : i32
    return %arg0, %arg1, %c0_i32 : i32, i32, i32
  }
}

</mosaic_0001>

<llo_original>
// kernel: tpu_custom_call.1
$region0: #{tpu_custom_call.1}
  #allocation0 [shape = 'u32[]', space=smem, size = 0x4, offset = 0x4, fixed_abs, tag = 'smem constant byte address 0x4 - core index']
  #allocation1 [shape = 'u32[144,128]{1,0:T(1,128)}', space=vmem, size = 0x12000, scoped, tag = 'internal scratch']
  %s0 = inlined_call_operand.vmem [shape: bf16[200,1200], index: 0, kind: input, shape index: {}]
  %s1 = inlined_call_operand.vmem [shape: bf16[1,1200,196], index: 1, kind: input, shape index: {}]
  %s2 = inlined_call_operand.vmem [shape: f32[1,200,196], index: 2, kind: output, shape index: {}]
  %s3 = sld [smem:[#allocation0]]
  $region41: #{tpu_custom_call.1} parent=0
    _
  %s5 = ssub.s32 1, %s3
  %s6 = scalar_select 0, %s5, %s3
  loop: start=0, step=1, limit=7
  $region2: #{tpu_custom_call.1} parent=0 // loop_pre_header
    _
  $region3: #{tpu_custom_call.1} parent=0 // loop_header
    %s8 = sphi 0, %s12
    %p9 = scmp.ge.s32.totalorder %s8, 7
    %s15 = sphi 0, %s27
    %s16 = sphi 0, %s23
    %s17 = sphi 0, %s15
    %s18 = sphi 0, %s16
    %s19 = sphi 0, %s17
    %s20 = sphi 0, %s18
    %s30 = sphi 0, %s32
    %s33 = sphi 0, %s30
    %s34 = sphi 0, %s33
    %s50 = sphi 0, %s34
    %s56 = sphi 0, %s58
    %s59 = sphi 0, %s56
    %s60 = sphi 0, %s59
    %s76 = sphi 0, %s60
    %s84 = sphi 0, %s86
    %s87 = sphi 0, %s84
    %s88 = sphi 0, %s87
    %s104 = sphi 0, %s88
  $region4: #{tpu_custom_call.1} parent=0 // loop_header_branch
    %11 = sbr.rel (%p9) target = $region8
  $region5: #{tpu_custom_call.1} parent=0 // loop_body
    %s13 = ssub.s32 %s8, 1
    %s14 = ssub.s32 %s8, 2
    %s21 = sadd.s32 1, %s16
    %p22 = scmp.ge.s32.totalorder %s21, 5
    %s23 = scalar_select %p22, 0, %s21
    %s24 = sadd.s32 1, %s15
    %s25 = scalar_select %p22, %s24, %s15
    %p26 = scmp.ge.s32.totalorder %s25, 1
    %s27 = scalar_select %p26, 0, %s25
    %s28 = ssub.s32 %s16, %s23
    %p29 = scmp.eq.s32.totalorder %s28, 0
    %s31 = sadd.s32 %s30, 1
    %s32 = scalar_select %p29, %s30, %s31
    %p35 = pneg %p29
    %p36 = scmp.eq.s32.totalorder %s8, 4
    %p37 = por %p35, %p36
    %p38 = scmp.ne.s32.totalorder %s30, %s33
    %p39 = scmp.eq.s32.totalorder %s8, 0
    %p40 = por %p38, %p39
    %p41 = scmp.ne.s32.totalorder %s30, %s33
    %p42 = scmp.eq.s32.totalorder %s13, 4
    %p43 = por %p41, %p42
    %p44 = scmp.ne.s32.totalorder %s33, %s34
    %p45 = scmp.eq.s32.totalorder %s13, 0
    %p46 = por %p44, %p45
    %p47 = scmp.ne.s32.totalorder %s33, %s34
    %p48 = scmp.eq.s32.totalorder %s14, 4
    %p49 = por %p47, %p48
    %p51 = scmp.ne.s32.totalorder %s34, %s50
    %p52 = scmp.eq.s32.totalorder %s14, 0
    %p53 = por %p51, %p52
    %s54 = ssub.s32 %s15, %s27
    %p55 = scmp.eq.s32.totalorder %s54, 0
    %s57 = sadd.s32 %s56, 1
    %s58 = scalar_select %p55, %s56, %s57
    %p61 = pneg %p55
    %p62 = scmp.eq.s32.totalorder %s8, 4
    %p63 = por %p61, %p62
    %p64 = scmp.ne.s32.totalorder %s56, %s59
    %p65 = scmp.eq.s32.totalorder %s8, 0
    %p66 = por %p64, %p65
    %p67 = scmp.ne.s32.totalorder %s56, %s59
    %p68 = scmp.eq.s32.totalorder %s13, 4
    %p69 = por %p67, %p68
    %p70 = scmp.ne.s32.totalorder %s59, %s60
    %p71 = scmp.eq.s32.totalorder %s13, 0
    %p72 = por %p70, %p71
    %p73 = scmp.ne.s32.totalorder %s59, %s60
    %p74 = scmp.eq.s32.totalorder %s14, 4
    %p75 = por %p73, %p74
    %p77 = scmp.ne.s32.totalorder %s60, %s76
    %p78 = scmp.eq.s32.totalorder %s14, 0
    %p79 = por %p77, %p78
    %s80 = ssub.s32 %s15, %s27
    %s81 = ssub.s32 %s16, %s23
    %s82 = sor.u32 %s80, %s81
    %p83 = scmp.eq.s32.totalorder %s82, 0
    %s85 = sadd.s32 %s84, 1
    %s86 = scalar_select %p83, %s84, %s85
    %p89 = pneg %p83
    %p90 = scmp.eq.s32.totalorder %s8, 4
    %p91 = por %p89, %p90
    %p92 = scmp.ne.s32.totalorder %s84, %s87
    %p93 = scmp.eq.s32.totalorder %s8, 0
    %p94 = por %p92, %p93
    %p95 = scmp.ne.s32.totalorder %s84, %s87
    %p96 = scmp.eq.s32.totalorder %s13, 4
    %p97 = por %p95, %p96
    %p98 = scmp.ne.s32.totalorder %s87, %s88
    %p99 = scmp.eq.s32.totalorder %s13, 0
    %p100 = por %p98, %p99
    %p101 = scmp.ne.s32.totalorder %s87, %s88
    %p102 = scmp.eq.s32.totalorder %s14, 4
    %p103 = por %p101, %p102
    %p105 = scmp.ne.s32.totalorder %s88, %s104
    %p106 = scmp.eq.s32.totalorder %s14, 0
    %p107 = por %p105, %p106
    %p108 = scmp.le.s32.totalorder 1, %s8
    %p109 = scmp.lt.s32.totalorder %s8, 6
    %p110 = pnand %p108, %p109
    %p111 = pneg %p110
    // Predicated region
    $region9: #{tpu_custom_call.1} parent=5 // pred_check
      _
    $region10: #{tpu_custom_call.1} parent=5 // pred_check_branch
      %113 = sbr.rel (%p110) target = $region12
    $region11: #{tpu_custom_call.1} parent=5 // pred_region
      %s114 = ssub.s32 %s8, 1
      // Predicated region
      $region13: #{tpu_custom_call.1} parent=11 // pred_check
        %p115 = pneg %p72
      $region14: #{tpu_custom_call.1} parent=11 // pred_check_branch
        %117 = sbr.rel (%p115) target = $region16
      $region15: #{tpu_custom_call.1} parent=11 // pred_region
        %p118 = scmp.lt.s32.totalorder %s17, 0
        %s119 = scalar_select %p118, %s17, 0
        %s120 = smul.addr %s119, 300
        %s121 = smul.addr %s120, 4
        %s122 = scalar_lea.vmem %s1, %s121
      $region16: #{tpu_custom_call.1} parent=11 // pred_fallthru
        _
    $region12: #{tpu_custom_call.1} parent=5 // pred_fallthru
      _
    %p123 = scmp.lt.s32.totalorder %s8, 5
    // Predicated region
    $region17: #{tpu_custom_call.1} parent=5 // pred_check
      %p124 = pneg %p123
    $region18: #{tpu_custom_call.1} parent=5 // pred_check_branch
      %126 = sbr.rel (%p124) target = $region20
    $region19: #{tpu_custom_call.1} parent=5 // pred_region
      // Predicated region
      $region21: #{tpu_custom_call.1} parent=19 // pred_check
        %p127 = pneg %p40
      $region22: #{tpu_custom_call.1} parent=19 // pred_check_branch
        %129 = sbr.rel (%p127) target = $region24
      $region23: #{tpu_custom_call.1} parent=19 // pred_region
        %s130 = smul.u32 5, %s16
        %p131 = scmp.lt.s32.totalorder %s130, 24
        %s132 = scalar_select %p131, %s130, 24
        %s133 = smul.addr %s132, 10
        %s134 = smul.addr %s133, 4
        %s135 = scalar_lea.vmem %s0, %s134
        %s136 = smul.u32 5, %s16
      $region24: #{tpu_custom_call.1} parent=19 // pred_fallthru
        _
    $region20: #{tpu_custom_call.1} parent=5 // pred_fallthru
      _
    %p137 = scmp.le.s32.totalorder 1, %s8
    %p138 = scmp.lt.s32.totalorder %s8, 6
    %p139 = pnand %p137, %p138
    %p140 = pneg %p139
    // Predicated region
    $region25: #{tpu_custom_call.1} parent=5 // pred_check
      _
    $region26: #{tpu_custom_call.1} parent=5 // pred_check_branch
      %142 = sbr.rel (%p139) target = $region28
    $region27: #{tpu_custom_call.1} parent=5 // pred_region
      %s143 = ssub.s32 %s8, 1
      %s144 = smul.u32 5, %s18
      %p145 = scmp.lt.s32.totalorder %s144, 24
      %s146 = scalar_select %p145, %s144, 24
      %s147 = smul.addr %s146, 10
      %s148 = smul.addr %s147, 4
      %s149 = scalar_lea.vmem %s0, %s148
      %p150 = pneg %p46
      %p151 = pneg %p43
      %p152 = scmp.lt.s32.totalorder %s17, 0
      %s153 = scalar_select %p152, %s17, 0
      %s154 = smul.addr %s153, 300
      %s155 = smul.addr %s154, 4
      %s156 = scalar_lea.vmem %s1, %s155
      %p157 = pneg %p72
      %p158 = pneg %p69
      %p159 = pneg %p100
      %p160 = pneg %p97
      %s161 = smul.u32 5, %s18
      %p162 = scmp.lt.s32.totalorder %s17, 0
      %s163 = scalar_select %p162, %s17, 0
      %p164 = scmp.lt.s32.totalorder %s161, 24
      %s165 = scalar_select %p164, %s161, 24
      %s166 = smul.addr %s165, 2
      %s167 = smul.addr %s163, 50
      %s168 = sadd.s32 %s166, %s167
      %s169 = smul.addr %s168, 8
      %s170 = scalar_lea.vmem %s2, %s169
      %s171 = smul.u32 5, %s18
      %p172 = scmp.lt.s32.totalorder %s171, 24
      %s173 = scalar_select %p172, %s171, 24
      %s174 = smul.addr %s173, 10
      %s175 = smul.addr %s174, 4
      %s176 = scalar_lea.vmem %s0, %s175
      %s177 = smul.u32 5, %s18
      %p178 = scmp.lt.s32.totalorder %s17, 0
      %s179 = scalar_select %p178, %s17, 0
      %s180 = smul.addr %s179, 300
      %s181 = smul.addr %s180, 4
      %s182 = scalar_lea.vmem %s1, %s181
      %s183 = smul.u32 5, %s18
      %p184 = scmp.lt.s32.totalorder %s17, 0
      %s185 = scalar_select %p184, %s17, 0
      %p186 = scmp.lt.s32.totalorder %s183, 24
      %s187 = scalar_select %p186, %s183, 24
      %s188 = smul.addr %s187, 2
      %s189 = smul.addr %s185, 50
      %s190 = sadd.s32 %s188, %s189
      %s191 = smul.addr %s190, 8
      %s192 = scalar_lea.vmem %s2, %s191
      %s193 = smul.u32 5, %s18
      %v195 = vld [vmem:[%s176] sm:$0xff]
      %v196 = vld [vmem:[%s176 + $0x8] sm:$0xff]
      %v197 = vld [vmem:[%s176 + $0x10] sm:$0xff]
      %v198 = vld [vmem:[%s176 + $0x18] sm:$0xff]
      %v199 = vld [vmem:[%s176 + $0x20] sm:$0xff]
      %v200 = vld [vmem:[%s176 + $0x28] sm:$0xff]
      %v201 = vld [vmem:[%s176 + $0x30] sm:$0xff]
      %v202 = vld [vmem:[%s176 + $0x38] sm:$0xff]
      %v203 = vld [vmem:[%s176 + $0x40] sm:$0xff]
      %v204 = vld [vmem:[%s176 + $0x48] sm:$0xff]
      %v205 = vld [vmem:[%s176 + $0x50] sm:$0xff]
      %v206 = vld [vmem:[%s176 + $0x58] sm:$0xff]
      %v207 = vld [vmem:[%s176 + $0x60] sm:$0xff]
      %v208 = vld [vmem:[%s176 + $0x68] sm:$0xff]
      %v209 = vld [vmem:[%s176 + $0x70] sm:$0xff]
      %v210 = vld [vmem:[%s176 + $0x78] sm:$0xff]
      %v211 = vld [vmem:[%s176 + $0x80] sm:$0xff]
      %v212 = vld [vmem:[%s176 + $0x88] sm:$0xff]
      %v213 = vld [vmem:[%s176 + $0x90] sm:$0xff]
      %v214 = vld [vmem:[%s176 + $0x98] sm:$0xff]
      %v215 = vld [vmem:[%s176 + $0xa0] sm:$0xff]
      %v216 = vld [vmem:[%s176 + $0xa8] sm:$0xff]
      %v217 = vld [vmem:[%s176 + $0xb0] sm:$0xff]
      %v218 = vld [vmem:[%s176 + $0xb8] sm:$0xff]
      %v219 = vld [vmem:[%s176 + $0xc0] sm:$0xff]
      %v220 = vld [vmem:[%s182] sm:$0xff]
      %v221 = vld [vmem:[%s182 + $0x8] sm:$0xff]
      %v222 = vld [vmem:[%s182 + $0x10] sm:$0xff]
      %v223 = vld [vmem:[%s182 + $0x18] sm:$0xff]
      %v224 = vld [vmem:[%s182 + $0x20] sm:$0xff]
      %v225 = vld [vmem:[%s182 + $0x28] sm:$0xff]
      %v226 = vld [vmem:[%s182 + $0x30] sm:$0xff]
      %v227 = vld [vmem:[%s182 + $0x38] sm:$0xff]
      %v228 = vld [vmem:[%s182 + $0x40] sm:$0xff]
      %v229 = vld [vmem:[%s182 + $0x48] sm:$0xff]
      %v230 = vld [vmem:[%s182 + $0x50] sm:$0xff]
      %v231 = vld [vmem:[%s182 + $0x58] sm:$0xff]
      %v232 = vld [vmem:[%s182 + $0x60] sm:$0xff]
      %v233 = vld [vmem:[%s182 + $0x68] sm:$0xff]
      %v234 = vld [vmem:[%s182 + $0x70] sm:$0xff]
      %v235 = vld [vmem:[%s182 + $0x78] sm:$0xff]
      %v236 = vld [vmem:[%s182 + $0x80] sm:$0xff]
      %v237 = vld [vmem:[%s182 + $0x88] sm:$0xff]
      %v238 = vld [vmem:[%s182 + $0x90] sm:$0xff]
      %v239 = vld [vmem:[%s182 + $0x98] sm:$0xff]
      %v240 = vld [vmem:[%s182 + $0xa0] sm:$0xff]
      %v241 = vld [vmem:[%s182 + $0xa8] sm:$0xff]
      %v242 = vld [vmem:[%s182 + $0xb0] sm:$0xff]
      %v243 = vld [vmem:[%s182 + $0xb8] sm:$0xff]
      %v244 = vld [vmem:[%s182 + $0xc0] sm:$0xff]
      %v245 = vld [vmem:[%s182 + $0xc8] sm:$0xff]
      %v246 = vld [vmem:[%s182 + $0xd0] sm:$0xff]
      %v247 = vld [vmem:[%s182 + $0xd8] sm:$0xff]
      %v248 = vld [vmem:[%s182 + $0xe0] sm:$0xff]
      %v249 = vld [vmem:[%s182 + $0xe8] sm:$0xff]
      %v250 = vld [vmem:[%s182 + $0xf0] sm:$0xff]
      %v251 = vld [vmem:[%s182 + $0xf8] sm:$0xff]
      %v252 = vld [vmem:[%s182 + $0x100] sm:$0xff]
      %v253 = vld [vmem:[%s182 + $0x108] sm:$0xff]
      %v254 = vld [vmem:[%s182 + $0x110] sm:$0xff]
      %v255 = vld [vmem:[%s182 + $0x118] sm:$0xff]
      %v256 = vld [vmem:[%s182 + $0x120] sm:$0xff]
      %v257 = vld [vmem:[%s182 + $0x128] sm:$0xff]
      %v258 = vld [vmem:[%s182 + $0x130] sm:$0xff]
      %v259 = vld [vmem:[%s182 + $0x138] sm:$0xff]
      %v260 = vld [vmem:[%s182 + $0x140] sm:$0xff]
      %v261 = vld [vmem:[%s182 + $0x148] sm:$0xff]
      %v262 = vld [vmem:[%s182 + $0x150] sm:$0xff]
      %v263 = vld [vmem:[%s182 + $0x158] sm:$0xff]
      %v264 = vld [vmem:[%s182 + $0x160] sm:$0xff]
      %v265 = vld [vmem:[%s182 + $0x168] sm:$0xff]
      %v266 = vld [vmem:[%s182 + $0x170] sm:$0xff]
      %v267 = vld [vmem:[%s182 + $0x178] sm:$0xff]
      %v268 = vld [vmem:[%s182 + $0x180] sm:$0xff]
      %v269 = vld [vmem:[%s182 + $0x188] sm:$0xff]
      %v270 = vld [vmem:[%s182 + $0x190] sm:$0xff]
      %v271 = vld [vmem:[%s182 + $0x198] sm:$0xff]
      %v272 = vld [vmem:[%s182 + $0x1a0] sm:$0xff]
      %v273 = vld [vmem:[%s182 + $0x1a8] sm:$0xff]
      %v274 = vld [vmem:[%s182 + $0x1b0] sm:$0xff]
      %v275 = vld [vmem:[%s182 + $0x1b8] sm:$0xff]
      %v276 = vld [vmem:[%s182 + $0x1c0] sm:$0xff]
      %v277 = vld [vmem:[%s182 + $0x1c8] sm:$0xff]
      %v278 = vld [vmem:[%s182 + $0x1d0] sm:$0xff]
      %v279 = vld [vmem:[%s182 + $0x1d8] sm:$0xff]
      %v280 = vld [vmem:[%s182 + $0x1e0] sm:$0xff]
      %v281 = vld [vmem:[%s182 + $0x1e8] sm:$0xff]
      %v282 = vld [vmem:[%s182 + $0x1f0] sm:$0xff]
      %v283 = vld [vmem:[%s182 + $0x1f8] sm:$0xff]
      %v284 = vld [vmem:[%s182 + $0x200] sm:$0xff]
      %v285 = vld [vmem:[%s182 + $0x208] sm:$0xff]
      %v286 = vld [vmem:[%s182 + $0x210] sm:$0xff]
      %v287 = vld [vmem:[%s182 + $0x218] sm:$0xff]
      %v288 = vld [vmem:[%s182 + $0x220] sm:$0xff]
      %v289 = vld [vmem:[%s182 + $0x228] sm:$0xff]
      %v290 = vld [vmem:[%s182 + $0x230] sm:$0xff]
      %v291 = vld [vmem:[%s182 + $0x238] sm:$0xff]
      %v292 = vld [vmem:[%s182 + $0x240] sm:$0xff]
      %v293 = vld [vmem:[%s182 + $0x248] sm:$0xff]
      %v294 = vld [vmem:[%s182 + $0x250] sm:$0xff]
      %v295 = vld [vmem:[%s182 + $0x258] sm:$0xff]
      %v296 = vld [vmem:[%s182 + $0x260] sm:$0xff]
      %v297 = vld [vmem:[%s182 + $0x268] sm:$0xff]
      %v298 = vld [vmem:[%s182 + $0x270] sm:$0xff]
      %v299 = vld [vmem:[%s182 + $0x278] sm:$0xff]
      %v300 = vld [vmem:[%s182 + $0x280] sm:$0xff]
      %v301 = vld [vmem:[%s182 + $0x288] sm:$0xff]
      %v302 = vld [vmem:[%s182 + $0x290] sm:$0xff]
      %v303 = vld [vmem:[%s182 + $0x298] sm:$0xff]
      %v304 = vld [vmem:[%s182 + $0x2a0] sm:$0xff]
      %v305 = vld [vmem:[%s182 + $0x2a8] sm:$0xff]
      %v306 = vld [vmem:[%s182 + $0x2b0] sm:$0xff]
      %v307 = vld [vmem:[%s182 + $0x2b8] sm:$0xff]
      %v308 = vld [vmem:[%s182 + $0x2c0] sm:$0xff]
      %v309 = vld [vmem:[%s182 + $0x2c8] sm:$0xff]
      %v310 = vld [vmem:[%s182 + $0x2d0] sm:$0xff]
      %v311 = vld [vmem:[%s182 + $0x2d8] sm:$0xff]
      %v312 = vld [vmem:[%s182 + $0x2e0] sm:$0xff]
      %v313 = vld [vmem:[%s182 + $0x2e8] sm:$0xff]
      %v314 = vld [vmem:[%s182 + $0x2f0] sm:$0xff]
      %v315 = vld [vmem:[%s182 + $0x2f8] sm:$0xff]
      %v316 = vld [vmem:[%s182 + $0x300] sm:$0xff]
      %v317 = vld [vmem:[%s182 + $0x308] sm:$0xff]
      %v318 = vld [vmem:[%s182 + $0x310] sm:$0xff]
      %v319 = vld [vmem:[%s182 + $0x318] sm:$0xff]
      %v320 = vld [vmem:[%s182 + $0x320] sm:$0xff]
      %v321 = vld [vmem:[%s182 + $0x328] sm:$0xff]
      %v322 = vld [vmem:[%s182 + $0x330] sm:$0xff]
      %v323 = vld [vmem:[%s182 + $0x338] sm:$0xff]
      %v324 = vld [vmem:[%s182 + $0x340] sm:$0xff]
      %v325 = vld [vmem:[%s182 + $0x348] sm:$0xff]
      %v326 = vld [vmem:[%s182 + $0x350] sm:$0xff]
      %v327 = vld [vmem:[%s182 + $0x358] sm:$0xff]
      %v328 = vld [vmem:[%s182 + $0x360] sm:$0xff]
      %v329 = vld [vmem:[%s182 + $0x368] sm:$0xff]
      %v330 = vld [vmem:[%s182 + $0x370] sm:$0xff]
      %v331 = vld [vmem:[%s182 + $0x378] sm:$0xff]
      %v332 = vld [vmem:[%s182 + $0x380] sm:$0xff]
      %v333 = vld [vmem:[%s182 + $0x388] sm:$0xff]
      %v334 = vld [vmem:[%s182 + $0x390] sm:$0xff]
      %v335 = vld [vmem:[%s182 + $0x398] sm:$0xff]
      %v336 = vld [vmem:[%s182 + $0x3a0] sm:$0xff]
      %v337 = vld [vmem:[%s182 + $0x3a8] sm:$0xff]
      %v338 = vld [vmem:[%s182 + $0x3b0] sm:$0xff]
      %v339 = vld [vmem:[%s182 + $0x3b8] sm:$0xff]
      %v340 = vld [vmem:[%s182 + $0x3c0] sm:$0xff]
      %v341 = vld [vmem:[%s182 + $0x3c8] sm:$0xff]
      %v342 = vld [vmem:[%s182 + $0x3d0] sm:$0xff]
      %v343 = vld [vmem:[%s182 + $0x3d8] sm:$0xff]
      %v344 = vld [vmem:[%s182 + $0x3e0] sm:$0xff]
      %v345 = vld [vmem:[%s182 + $0x3e8] sm:$0xff]
      %v346 = vld [vmem:[%s182 + $0x3f0] sm:$0xff]
      %v347 = vld [vmem:[%s182 + $0x3f8] sm:$0xff]
      %v348 = vld [vmem:[%s182 + $0x400] sm:$0xff]
      %v349 = vld [vmem:[%s182 + $0x408] sm:$0xff]
      %v350 = vld [vmem:[%s182 + $0x410] sm:$0xff]
      %v351 = vld [vmem:[%s182 + $0x418] sm:$0xff]
      %v352 = vld [vmem:[%s182 + $0x420] sm:$0xff]
      %v353 = vld [vmem:[%s182 + $0x428] sm:$0xff]
      %v354 = vld [vmem:[%s182 + $0x430] sm:$0xff]
      %v355 = vld [vmem:[%s182 + $0x438] sm:$0xff]
      %v356 = vld [vmem:[%s182 + $0x440] sm:$0xff]
      %v357 = vld [vmem:[%s182 + $0x448] sm:$0xff]
      %v358 = vld [vmem:[%s182 + $0x450] sm:$0xff]
      %v359 = vld [vmem:[%s182 + $0x458] sm:$0xff]
      %v360 = vld [vmem:[%s182 + $0x460] sm:$0xff]
      %v361 = vld [vmem:[%s182 + $0x468] sm:$0xff]
      %v362 = vld [vmem:[%s182 + $0x470] sm:$0xff]
      %v363 = vld [vmem:[%s182 + $0x478] sm:$0xff]
      %v364 = vld [vmem:[%s182 + $0x480] sm:$0xff]
      %v365 = vld [vmem:[%s182 + $0x488] sm:$0xff]
      %v366 = vld [vmem:[%s182 + $0x490] sm:$0xff]
      %v367 = vld [vmem:[%s182 + $0x498] sm:$0xff]
      %v368 = vld [vmem:[%s182 + $0x4a0] sm:$0xff]
      %v369 = vld [vmem:[%s182 + $0x4a8] sm:$0xff]
      %v395 = vunpack.c.l.b16 %v195
      %v396 = vunpack.c.h.b16 %v195
      %v397 = vunpack.c.l.b16 %v196
      %v398 = vunpack.c.h.b16 %v196
      %v399 = vunpack.c.l.b16 %v197
      %v400 = vunpack.c.h.b16 %v197
      %v401 = vunpack.c.l.b16 %v198
      %v402 = vunpack.c.h.b16 %v198
      %v403 = vunpack.c.l.b16 %v199
      %v404 = vunpack.c.h.b16 %v199
      %v405 = vunpack.c.l.b16 %v200
      %v406 = vunpack.c.h.b16 %v200
      %v407 = vunpack.c.l.b16 %v201
      %v408 = vunpack.c.h.b16 %v201
      %v409 = vunpack.c.l.b16 %v202
      %v410 = vunpack.c.h.b16 %v202
      %v411 = vunpack.c.l.b16 %v203
      %v412 = vunpack.c.h.b16 %v203
      %v413 = vunpack.c.l.b16 %v204
      %v414 = vunpack.c.h.b16 %v204
      %v415 = vunpack.c.l.b16 %v205
      %v416 = vunpack.c.h.b16 %v205
      %v417 = vunpack.c.l.b16 %v206
      %v418 = vunpack.c.h.b16 %v206
      %v419 = vunpack.c.l.b16 %v207
      %v420 = vunpack.c.h.b16 %v207
      %v421 = vunpack.c.l.b16 %v208
      %v422 = vunpack.c.h.b16 %v208
      %v423 = vunpack.c.l.b16 %v209
      %v424 = vunpack.c.h.b16 %v209
      %v425 = vunpack.c.l.b16 %v210
      %v426 = vunpack.c.h.b16 %v210
      %v427 = vunpack.c.l.b16 %v211
      %v428 = vunpack.c.h.b16 %v211
      %v429 = vunpack.c.l.b16 %v212
      %v430 = vunpack.c.h.b16 %v212
      %v431 = vunpack.c.l.b16 %v213
      %v432 = vunpack.c.h.b16 %v213
      %v433 = vunpack.c.l.b16 %v214
      %v434 = vunpack.c.h.b16 %v214
      %v435 = vunpack.c.l.b16 %v215
      %v436 = vunpack.c.h.b16 %v215
      %v437 = vunpack.c.l.b16 %v216
      %v438 = vunpack.c.h.b16 %v216
      %v439 = vunpack.c.l.b16 %v217
      %v440 = vunpack.c.h.b16 %v217
      %v441 = vunpack.c.l.b16 %v218
      %v442 = vunpack.c.h.b16 %v218
      %v443 = vunpack.c.l.b16 %v219
      %v444 = vunpack.c.h.b16 %v219
      %v445 = vpack.c.b16 %v405, %v395
      %v446 = vpack.c.b16 %v406, %v396
      %v447 = vpack.c.b16 %v407, %v397
      %v448 = vpack.c.b16 %v408, %v398
      %v449 = vpack.c.b16 %v409, %v399
      %v450 = vpack.c.b16 %v410, %v400
      %v451 = vpack.c.b16 %v411, %v401
      %v452 = vpack.c.b16 %v412, %v402
      %v453 = vpack.c.b16 %v413, %v403
      %v454 = vpack.c.b16 %v414, %v404
      %v455 = vpack.c.b16 %v425, %v415
      %v456 = vpack.c.b16 %v426, %v416
      %v457 = vpack.c.b16 %v427, %v417
      %v458 = vpack.c.b16 %v428, %v418
      %v459 = vpack.c.b16 %v429, %v419
      %v460 = vpack.c.b16 %v430, %v420
      %v461 = vpack.c.b16 %v431, %v421
      %v462 = vpack.c.b16 %v432, %v422
      %v463 = vpack.c.b16 %v433, %v423
      %v464 = vpack.c.b16 %v434, %v424
      %v465 = vpack.c.b16 %v435, %v435
      %v466 = vpack.c.b16 %v436, %v436
      %v467 = vpack.c.b16 %v437, %v437
      %v468 = vpack.c.b16 %v438, %v438
      %v469 = vpack.c.b16 %v439, %v439
      %v470 = vpack.c.b16 %v440, %v440
      %v471 = vpack.c.b16 %v441, %v441
      %v472 = vpack.c.b16 %v442, %v442
      %v473 = vpack.c.b16 %v443, %v443
      %v474 = vpack.c.b16 %v444, %v444
      %v652 = vunpack.c.l.b16 %v220
      %v653 = vunpack.c.h.b16 %v220
      %v654 = vunpack.c.l.b16 %v221
      %v655 = vunpack.c.h.b16 %v221
      %v656 = vunpack.c.l.b16 %v222
      %v657 = vunpack.c.h.b16 %v222
      %v658 = vunpack.c.l.b16 %v223
      %v659 = vunpack.c.h.b16 %v223
      %v660 = vunpack.c.l.b16 %v224
      %v661 = vunpack.c.h.b16 %v224
      %v662 = vunpack.c.l.b16 %v225
      %v663 = vunpack.c.h.b16 %v225
      %v664 = vunpack.c.l.b16 %v226
      %v665 = vunpack.c.h.b16 %v226
      %v666 = vunpack.c.l.b16 %v227
      %v667 = vunpack.c.h.b16 %v227
      %v668 = vunpack.c.l.b16 %v228
      %v669 = vunpack.c.h.b16 %v228
      %v670 = vunpack.c.l.b16 %v229
      %v671 = vunpack.c.h.b16 %v229
      %v672 = vunpack.c.l.b16 %v230
      %v673 = vunpack.c.h.b16 %v230
      %v674 = vunpack.c.l.b16 %v231
      %v675 = vunpack.c.h.b16 %v231
      %v676 = vunpack.c.l.b16 %v232
      %v677 = vunpack.c.h.b16 %v232
      %v678 = vunpack.c.l.b16 %v233
      %v679 = vunpack.c.h.b16 %v233
      %v680 = vunpack.c.l.b16 %v234
      %v681 = vunpack.c.h.b16 %v234
      %v682 = vunpack.c.l.b16 %v235
      %v683 = vunpack.c.h.b16 %v235
      %v684 = vunpack.c.l.b16 %v236
      %v685 = vunpack.c.h.b16 %v236
      %v686 = vunpack.c.l.b16 %v237
      %v687 = vunpack.c.h.b16 %v237
      %v688 = vunpack.c.l.b16 %v238
      %v689 = vunpack.c.h.b16 %v238
      %v690 = vunpack.c.l.b16 %v239
      %v691 = vunpack.c.h.b16 %v239
      %v692 = vunpack.c.l.b16 %v240
      %v693 = vunpack.c.h.b16 %v240
      %v694 = vunpack.c.l.b16 %v241
      %v695 = vunpack.c.h.b16 %v241
      %v696 = vunpack.c.l.b16 %v242
      %v697 = vunpack.c.h.b16 %v242
      %v698 = vunpack.c.l.b16 %v243
      %v699 = vunpack.c.h.b16 %v243
      %v700 = vunpack.c.l.b16 %v244
      %v701 = vunpack.c.h.b16 %v244
      %v702 = vunpack.c.l.b16 %v245
      %v703 = vunpack.c.h.b16 %v245
      %v704 = vunpack.c.l.b16 %v246
      %v705 = vunpack.c.h.b16 %v246
      %v706 = vunpack.c.l.b16 %v247
      %v707 = vunpack.c.h.b16 %v247
      %v708 = vunpack.c.l.b16 %v248
      %v709 = vunpack.c.h.b16 %v248
      %v710 = vunpack.c.l.b16 %v249
      %v711 = vunpack.c.h.b16 %v249
      %v712 = vunpack.c.l.b16 %v250
      %v713 = vunpack.c.h.b16 %v250
      %v714 = vunpack.c.l.b16 %v251
      %v715 = vunpack.c.h.b16 %v251
      %v716 = vunpack.c.l.b16 %v252
      %v717 = vunpack.c.h.b16 %v252
      %v718 = vunpack.c.l.b16 %v253
      %v719 = vunpack.c.h.b16 %v253
      %v720 = vunpack.c.l.b16 %v254
      %v721 = vunpack.c.h.b16 %v254
      %v722 = vunpack.c.l.b16 %v255
      %v723 = vunpack.c.h.b16 %v255
      %v724 = vunpack.c.l.b16 %v256
      %v725 = vunpack.c.h.b16 %v256
      %v726 = vunpack.c.l.b16 %v257
      %v727 = vunpack.c.h.b16 %v257
      %v728 = vunpack.c.l.b16 %v258
      %v729 = vunpack.c.h.b16 %v258
      %v730 = vunpack.c.l.b16 %v259
      %v731 = vunpack.c.h.b16 %v259
      %v732 = vunpack.c.l.b16 %v260
      %v733 = vunpack.c.h.b16 %v260
      %v734 = vunpack.c.l.b16 %v261
      %v735 = vunpack.c.h.b16 %v261
      %v736 = vunpack.c.l.b16 %v262
      %v737 = vunpack.c.h.b16 %v262
      %v738 = vunpack.c.l.b16 %v263
      %v739 = vunpack.c.h.b16 %v263
      %v740 = vunpack.c.l.b16 %v264
      %v741 = vunpack.c.h.b16 %v264
      %v742 = vunpack.c.l.b16 %v265
      %v743 = vunpack.c.h.b16 %v265
      %v744 = vunpack.c.l.b16 %v266
      %v745 = vunpack.c.h.b16 %v266
      %v746 = vunpack.c.l.b16 %v267
      %v747 = vunpack.c.h.b16 %v267
      %v748 = vunpack.c.l.b16 %v268
      %v749 = vunpack.c.h.b16 %v268
      %v750 = vunpack.c.l.b16 %v269
      %v751 = vunpack.c.h.b16 %v269
      %v752 = vunpack.c.l.b16 %v270
      %v753 = vunpack.c.h.b16 %v270
      %v754 = vunpack.c.l.b16 %v271
      %v755 = vunpack.c.h.b16 %v271
      %v756 = vunpack.c.l.b16 %v272
      %v757 = vunpack.c.h.b16 %v272
      %v758 = vunpack.c.l.b16 %v273
      %v759 = vunpack.c.h.b16 %v273
      %v760 = vunpack.c.l.b16 %v274
      %v761 = vunpack.c.h.b16 %v274
      %v762 = vunpack.c.l.b16 %v275
      %v763 = vunpack.c.h.b16 %v275
      %v764 = vunpack.c.l.b16 %v276
      %v765 = vunpack.c.h.b16 %v276
      %v766 = vunpack.c.l.b16 %v277
      %v767 = vunpack.c.h.b16 %v277
      %v768 = vunpack.c.l.b16 %v278
      %v769 = vunpack.c.h.b16 %v278
      %v770 = vunpack.c.l.b16 %v279
      %v771 = vunpack.c.h.b16 %v279
      %v772 = vunpack.c.l.b16 %v280
      %v773 = vunpack.c.h.b16 %v280
      %v774 = vunpack.c.l.b16 %v281
      %v775 = vunpack.c.h.b16 %v281
      %v776 = vunpack.c.l.b16 %v282
      %v777 = vunpack.c.h.b16 %v282
      %v778 = vunpack.c.l.b16 %v283
      %v779 = vunpack.c.h.b16 %v283
      %v780 = vunpack.c.l.b16 %v284
      %v781 = vunpack.c.h.b16 %v284
      %v782 = vunpack.c.l.b16 %v285
      %v783 = vunpack.c.h.b16 %v285
      %v784 = vunpack.c.l.b16 %v286
      %v785 = vunpack.c.h.b16 %v286
      %v786 = vunpack.c.l.b16 %v287
      %v787 = vunpack.c.h.b16 %v287
      %v788 = vunpack.c.l.b16 %v288
      %v789 = vunpack.c.h.b16 %v288
      %v790 = vunpack.c.l.b16 %v289
      %v791 = vunpack.c.h.b16 %v289
      %v792 = vunpack.c.l.b16 %v290
      %v793 = vunpack.c.h.b16 %v290
      %v794 = vunpack.c.l.b16 %v291
      %v795 = vunpack.c.h.b16 %v291
      %v796 = vunpack.c.l.b16 %v292
      %v797 = vunpack.c.h.b16 %v292
      %v798 = vunpack.c.l.b16 %v293
      %v799 = vunpack.c.h.b16 %v293
      %v800 = vunpack.c.l.b16 %v294
      %v801 = vunpack.c.h.b16 %v294
      %v802 = vunpack.c.l.b16 %v295
      %v803 = vunpack.c.h.b16 %v295
      %v804 = vunpack.c.l.b16 %v296
      %v805 = vunpack.c.h.b16 %v296
      %v806 = vunpack.c.l.b16 %v297
      %v807 = vunpack.c.h.b16 %v297
      %v808 = vunpack.c.l.b16 %v298
      %v809 = vunpack.c.h.b16 %v298
      %v810 = vunpack.c.l.b16 %v299
      %v811 = vunpack.c.h.b16 %v299
      %v812 = vunpack.c.l.b16 %v300
      %v813 = vunpack.c.h.b16 %v300
      %v814 = vunpack.c.l.b16 %v301
      %v815 = vunpack.c.h.b16 %v301
      %v816 = vunpack.c.l.b16 %v302
      %v817 = vunpack.c.h.b16 %v302
      %v818 = vunpack.c.l.b16 %v303
      %v819 = vunpack.c.h.b16 %v303
      %v820 = vunpack.c.l.b16 %v304
      %v821 = vunpack.c.h.b16 %v304
      %v822 = vunpack.c.l.b16 %v305
      %v823 = vunpack.c.h.b16 %v305
      %v824 = vunpack.c.l.b16 %v306
      %v825 = vunpack.c.h.b16 %v306
      %v826 = vunpack.c.l.b16 %v307
      %v827 = vunpack.c.h.b16 %v307
      %v828 = vunpack.c.l.b16 %v308
      %v829 = vunpack.c.h.b16 %v308
      %v830 = vunpack.c.l.b16 %v309
      %v831 = vunpack.c.h.b16 %v309
      %v832 = vunpack.c.l.b16 %v310
      %v833 = vunpack.c.h.b16 %v310
      %v834 = vunpack.c.l.b16 %v311
      %v835 = vunpack.c.h.b16 %v311
      %v836 = vunpack.c.l.b16 %v312
      %v837 = vunpack.c.h.b16 %v312
      %v838 = vunpack.c.l.b16 %v313
      %v839 = vunpack.c.h.b16 %v313
      %v840 = vunpack.c.l.b16 %v314
      %v841 = vunpack.c.h.b16 %v314
      %v842 = vunpack.c.l.b16 %v315
      %v843 = vunpack.c.h.b16 %v315
      %v844 = vunpack.c.l.b16 %v316
      %v845 = vunpack.c.h.b16 %v316
      %v846 = vunpack.c.l.b16 %v317
      %v847 = vunpack.c.h.b16 %v317
      %v848 = vunpack.c.l.b16 %v318
      %v849 = vunpack.c.h.b16 %v318
      %v850 = vunpack.c.l.b16 %v319
      %v851 = vunpack.c.h.b16 %v319
      %v852 = vunpack.c.l.b16 %v320
      %v853 = vunpack.c.h.b16 %v320
      %v854 = vunpack.c.l.b16 %v321
      %v855 = vunpack.c.h.b16 %v321
      %v856 = vunpack.c.l.b16 %v322
      %v857 = vunpack.c.h.b16 %v322
      %v858 = vunpack.c.l.b16 %v323
      %v859 = vunpack.c.h.b16 %v323
      %v860 = vunpack.c.l.b16 %v324
      %v861 = vunpack.c.h.b16 %v324
      %v862 = vunpack.c.l.b16 %v325
      %v863 = vunpack.c.h.b16 %v325
      %v864 = vunpack.c.l.b16 %v326
      %v865 = vunpack.c.h.b16 %v326
      %v866 = vunpack.c.l.b16 %v327
      %v867 = vunpack.c.h.b16 %v327
      %v868 = vunpack.c.l.b16 %v328
      %v869 = vunpack.c.h.b16 %v328
      %v870 = vunpack.c.l.b16 %v329
      %v871 = vunpack.c.h.b16 %v329
      %v872 = vunpack.c.l.b16 %v330
      %v873 = vunpack.c.h.b16 %v330
      %v874 = vunpack.c.l.b16 %v331
      %v875 = vunpack.c.h.b16 %v331
      %v876 = vunpack.c.l.b16 %v332
      %v877 = vunpack.c.h.b16 %v332
      %v878 = vunpack.c.l.b16 %v333
      %v879 = vunpack.c.h.b16 %v333
      %v880 = vunpack.c.l.b16 %v334
      %v881 = vunpack.c.h.b16 %v334
      %v882 = vunpack.c.l.b16 %v335
      %v883 = vunpack.c.h.b16 %v335
      %v884 = vunpack.c.l.b16 %v336
      %v885 = vunpack.c.h.b16 %v336
      %v886 = vunpack.c.l.b16 %v337
      %v887 = vunpack.c.h.b16 %v337
      %v888 = vunpack.c.l.b16 %v338
      %v889 = vunpack.c.h.b16 %v338
      %v890 = vunpack.c.l.b16 %v339
      %v891 = vunpack.c.h.b16 %v339
      %v892 = vunpack.c.l.b16 %v340
      %v893 = vunpack.c.h.b16 %v340
      %v894 = vunpack.c.l.b16 %v341
      %v895 = vunpack.c.h.b16 %v341
      %v896 = vunpack.c.l.b16 %v342
      %v897 = vunpack.c.h.b16 %v342
      %v898 = vunpack.c.l.b16 %v343
      %v899 = vunpack.c.h.b16 %v343
      %v900 = vunpack.c.l.b16 %v344
      %v901 = vunpack.c.h.b16 %v344
      %v902 = vunpack.c.l.b16 %v345
      %v903 = vunpack.c.h.b16 %v345
      %v904 = vunpack.c.l.b16 %v346
      %v905 = vunpack.c.h.b16 %v346
      %v906 = vunpack.c.l.b16 %v347
      %v907 = vunpack.c.h.b16 %v347
      %v908 = vunpack.c.l.b16 %v348
      %v909 = vunpack.c.h.b16 %v348
      %v910 = vunpack.c.l.b16 %v349
      %v911 = vunpack.c.h.b16 %v349
      %v912 = vunpack.c.l.b16 %v350
      %v913 = vunpack.c.h.b16 %v350
      %v914 = vunpack.c.l.b16 %v351
      %v915 = vunpack.c.h.b16 %v351
      %v916 = vunpack.c.l.b16 %v352
      %v917 = vunpack.c.h.b16 %v352
      %v918 = vunpack.c.l.b16 %v353
      %v919 = vunpack.c.h.b16 %v353
      %v920 = vunpack.c.l.b16 %v354
      %v921 = vunpack.c.h.b16 %v354
      %v922 = vunpack.c.l.b16 %v355
      %v923 = vunpack.c.h.b16 %v355
      %v924 = vunpack.c.l.b16 %v356
      %v925 = vunpack.c.h.b16 %v356
      %v926 = vunpack.c.l.b16 %v357
      %v927 = vunpack.c.h.b16 %v357
      %v928 = vunpack.c.l.b16 %v358
      %v929 = vunpack.c.h.b16 %v358
      %v930 = vunpack.c.l.b16 %v359
      %v931 = vunpack.c.h.b16 %v359
      %v932 = vunpack.c.l.b16 %v360
      %v933 = vunpack.c.h.b16 %v360
      %v934 = vunpack.c.l.b16 %v361
      %v935 = vunpack.c.h.b16 %v361
      %v936 = vunpack.c.l.b16 %v362
      %v937 = vunpack.c.h.b16 %v362
      %v938 = vunpack.c.l.b16 %v363
      %v939 = vunpack.c.h.b16 %v363
      %v940 = vunpack.c.l.b16 %v364
      %v941 = vunpack.c.h.b16 %v364
      %v942 = vunpack.c.l.b16 %v365
      %v943 = vunpack.c.h.b16 %v365
      %v944 = vunpack.c.l.b16 %v366
      %v945 = vunpack.c.h.b16 %v366
      %v946 = vunpack.c.l.b16 %v367
      %v947 = vunpack.c.h.b16 %v367
      %v948 = vunpack.c.l.b16 %v368
      %v949 = vunpack.c.h.b16 %v368
      %v950 = vunpack.c.l.b16 %v369
      %v951 = vunpack.c.h.b16 %v369
      %v952 = vpack.c.b16 %v654, %v652
      %v953 = vpack.c.b16 %v655, %v653
      %v954 = vpack.c.b16 %v658, %v656
      %v955 = vpack.c.b16 %v659, %v657
      %v956 = vpack.c.b16 %v662, %v660
      %v957 = vpack.c.b16 %v663, %v661
      %v958 = vpack.c.b16 %v666, %v664
      %v959 = vpack.c.b16 %v667, %v665
      %v960 = vpack.c.b16 %v670, %v668
      %v961 = vpack.c.b16 %v671, %v669
      %v962 = vpack.c.b16 %v674, %v672
      %v963 = vpack.c.b16 %v675, %v673
      %v964 = vpack.c.b16 %v678, %v676
      %v965 = vpack.c.b16 %v679, %v677
      %v966 = vpack.c.b16 %v682, %v680
      %v967 = vpack.c.b16 %v683, %v681
      %v968 = vpack.c.b16 %v686, %v684
      %v969 = vpack.c.b16 %v687, %v685
      %v970 = vpack.c.b16 %v690, %v688
      %v971 = vpack.c.b16 %v691, %v689
      %v972 = vpack.c.b16 %v694, %v692
      %v973 = vpack.c.b16 %v695, %v693
      %v974 = vpack.c.b16 %v698, %v696
      %v975 = vpack.c.b16 %v699, %v697
      %v976 = vpack.c.b16 %v702, %v700
      %v977 = vpack.c.b16 %v703, %v701
      %v978 = vpack.c.b16 %v706, %v704
      %v979 = vpack.c.b16 %v707, %v705
      %v980 = vpack.c.b16 %v710, %v708
      %v981 = vpack.c.b16 %v711, %v709
      %v982 = vpack.c.b16 %v714, %v712
      %v983 = vpack.c.b16 %v715, %v713
      %v984 = vpack.c.b16 %v718, %v716
      %v985 = vpack.c.b16 %v719, %v717
      %v986 = vpack.c.b16 %v722, %v720
      %v987 = vpack.c.b16 %v723, %v721
      %v988 = vpack.c.b16 %v726, %v724
      %v989 = vpack.c.b16 %v727, %v725
      %v990 = vpack.c.b16 %v730, %v728
      %v991 = vpack.c.b16 %v731, %v729
      %v992 = vpack.c.b16 %v734, %v732
      %v993 = vpack.c.b16 %v735, %v733
      %v994 = vpack.c.b16 %v738, %v736
      %v995 = vpack.c.b16 %v739, %v737
      %v996 = vpack.c.b16 %v742, %v740
      %v997 = vpack.c.b16 %v743, %v741
      %v998 = vpack.c.b16 %v746, %v744
      %v999 = vpack.c.b16 %v747, %v745
      %v1000 = vpack.c.b16 %v750, %v748
      %v1001 = vpack.c.b16 %v751, %v749
      %v1002 = vpack.c.b16 %v754, %v752
      %v1003 = vpack.c.b16 %v755, %v753
      %v1004 = vpack.c.b16 %v758, %v756
      %v1005 = vpack.c.b16 %v759, %v757
      %v1006 = vpack.c.b16 %v762, %v760
      %v1007 = vpack.c.b16 %v763, %v761
      %v1008 = vpack.c.b16 %v766, %v764
      %v1009 = vpack.c.b16 %v767, %v765
      %v1010 = vpack.c.b16 %v770, %v768
      %v1011 = vpack.c.b16 %v771, %v769
      %v1012 = vpack.c.b16 %v774, %v772
      %v1013 = vpack.c.b16 %v775, %v773
      %v1014 = vpack.c.b16 %v778, %v776
      %v1015 = vpack.c.b16 %v779, %v777
      %v1016 = vpack.c.b16 %v782, %v780
      %v1017 = vpack.c.b16 %v783, %v781
      %v1018 = vpack.c.b16 %v786, %v784
      %v1019 = vpack.c.b16 %v787, %v785
      %v1020 = vpack.c.b16 %v790, %v788
      %v1021 = vpack.c.b16 %v791, %v789
      %v1022 = vpack.c.b16 %v794, %v792
      %v1023 = vpack.c.b16 %v795, %v793
      %v1024 = vpack.c.b16 %v798, %v796
      %v1025 = vpack.c.b16 %v799, %v797
      %v1026 = vpack.c.b16 %v802, %v800
      %v1027 = vpack.c.b16 %v803, %v801
      %v1028 = vpack.c.b16 %v806, %v804
      %v1029 = vpack.c.b16 %v807, %v805
      %v1030 = vpack.c.b16 %v810, %v808
      %v1031 = vpack.c.b16 %v811, %v809
      %v1032 = vpack.c.b16 %v814, %v812
      %v1033 = vpack.c.b16 %v815, %v813
      %v1034 = vpack.c.b16 %v818, %v816
      %v1035 = vpack.c.b16 %v819, %v817
      %v1036 = vpack.c.b16 %v822, %v820
      %v1037 = vpack.c.b16 %v823, %v821
      %v1038 = vpack.c.b16 %v826, %v824
      %v1039 = vpack.c.b16 %v827, %v825
      %v1040 = vpack.c.b16 %v830, %v828
      %v1041 = vpack.c.b16 %v831, %v829
      %v1042 = vpack.c.b16 %v834, %v832
      %v1043 = vpack.c.b16 %v835, %v833
      %v1044 = vpack.c.b16 %v838, %v836
      %v1045 = vpack.c.b16 %v839, %v837
      %v1046 = vpack.c.b16 %v842, %v840
      %v1047 = vpack.c.b16 %v843, %v841
      %v1048 = vpack.c.b16 %v846, %v844
      %v1049 = vpack.c.b16 %v847, %v845
      %v1050 = vpack.c.b16 %v850, %v848
      %v1051 = vpack.c.b16 %v851, %v849
      %v1052 = vpack.c.b16 %v854, %v852
      %v1053 = vpack.c.b16 %v855, %v853
      %v1054 = vpack.c.b16 %v858, %v856
      %v1055 = vpack.c.b16 %v859, %v857
      %v1056 = vpack.c.b16 %v862, %v860
      %v1057 = vpack.c.b16 %v863, %v861
      %v1058 = vpack.c.b16 %v866, %v864
      %v1059 = vpack.c.b16 %v867, %v865
      %v1060 = vpack.c.b16 %v870, %v868
      %v1061 = vpack.c.b16 %v871, %v869
      %v1062 = vpack.c.b16 %v874, %v872
      %v1063 = vpack.c.b16 %v875, %v873
      %v1064 = vpack.c.b16 %v878, %v876
      %v1065 = vpack.c.b16 %v879, %v877
      %v1066 = vpack.c.b16 %v882, %v880
      %v1067 = vpack.c.b16 %v883, %v881
      %v1068 = vpack.c.b16 %v886, %v884
      %v1069 = vpack.c.b16 %v887, %v885
      %v1070 = vpack.c.b16 %v890, %v888
      %v1071 = vpack.c.b16 %v891, %v889
      %v1072 = vpack.c.b16 %v894, %v892
      %v1073 = vpack.c.b16 %v895, %v893
      %v1074 = vpack.c.b16 %v898, %v896
      %v1075 = vpack.c.b16 %v899, %v897
      %v1076 = vpack.c.b16 %v902, %v900
      %v1077 = vpack.c.b16 %v903, %v901
      %v1078 = vpack.c.b16 %v906, %v904
      %v1079 = vpack.c.b16 %v907, %v905
      %v1080 = vpack.c.b16 %v910, %v908
      %v1081 = vpack.c.b16 %v911, %v909
      %v1082 = vpack.c.b16 %v914, %v912
      %v1083 = vpack.c.b16 %v915, %v913
      %v1084 = vpack.c.b16 %v918, %v916
      %v1085 = vpack.c.b16 %v919, %v917
      %v1086 = vpack.c.b16 %v922, %v920
      %v1087 = vpack.c.b16 %v923, %v921
      %v1088 = vpack.c.b16 %v926, %v924
      %v1089 = vpack.c.b16 %v927, %v925
      %v1090 = vpack.c.b16 %v930, %v928
      %v1091 = vpack.c.b16 %v931, %v929
      %v1092 = vpack.c.b16 %v934, %v932
      %v1093 = vpack.c.b16 %v935, %v933
      %v1094 = vpack.c.b16 %v938, %v936
      %v1095 = vpack.c.b16 %v939, %v937
      %v1096 = vpack.c.b16 %v942, %v940
      %v1097 = vpack.c.b16 %v943, %v941
      %v1098 = vpack.c.b16 %v946, %v944
      %v1099 = vpack.c.b16 %v947, %v945
      %v1100 = vpack.c.b16 %v950, %v948
      %v1101 = vpack.c.b16 %v951, %v949
      %vm1252 = vcmask 392192
      %v1254 = vsel %vm1252, %v454, 0
      %v1257 = vsel %vm1252, %v464, 0
      %v1260 = vsel %vm1252, %v474, 0
      %1262 = vmatprep.subr.bf16.mxu0 %v953
      %1263 = vmatpush1.bf16.msra.mxu0 %v952
      %1264 = vmatprep.subr.bf16.mxu0 %v955
      %1265 = vmatpush1.bf16.msra.mxu0 %v954
      %1266 = vmatprep.subr.bf16.mxu0 %v957
      %1267 = vmatpush1.bf16.msra.mxu0 %v956
      %1268 = vmatprep.subr.bf16.mxu0 %v959
      %1269 = vmatpush1.bf16.msra.mxu0 %v958
      %1270 = vmatprep.subr.bf16.mxu0 %v961
      %1271 = vmatpush1.bf16.msra.mxu0 %v960
      %1272 = vmatprep.subr.bf16.mxu0 %v963
      %1273 = vmatpush1.bf16.msra.mxu0 %v962
      %1274 = vmatprep.subr.bf16.mxu0 %v965
      %1275 = vmatpush1.bf16.msra.mxu0 %v964
      %1276 = vmatprep.subr.bf16.mxu0 %v967
      %1277 = vmatpush1.bf16.msra.mxu0 %v966
      %1278 = vmatprep.subr.bf16.mxu0 %v969
      %1279 = vmatpush1.bf16.msra.mxu0 %v968
      %1280 = vmatprep.subr.bf16.mxu0 %v971
      %1281 = vmatpush1.bf16.msra.mxu0 %v970
      %1282 = vmatprep.subr.bf16.mxu0 %v973
      %1283 = vmatpush1.bf16.msra.mxu0 %v972
      %1284 = vmatprep.subr.bf16.mxu0 %v975
      %1285 = vmatpush1.bf16.msra.mxu0 %v974
      %1286 = vmatprep.subr.bf16.mxu0 %v977
      %1287 = vmatpush1.bf16.msra.mxu0 %v976
      %1288 = vmatprep.subr.bf16.mxu0 %v979
      %1289 = vmatpush1.bf16.msra.mxu0 %v978
      %1290 = vmatprep.subr.bf16.mxu0 %v981
      %1291 = vmatpush1.bf16.msra.mxu0 %v980
      %1292 = vmatprep.subr.bf16.mxu0 %v983
      %1293 = vmatpush1.bf16.msra.mxu0 %v982
      %1294 = vmatprep.mubr.bf16.mxu0 %v446
      %1295 = vmatmul.mubr.bf16.gmra.mrb[0].mxu0 %v445
      %v1296 = vpop.f32.mrb[0].mxu0
      %v1297 = vadd.f32 0.0, %v1296
      %v1298 = vpop.f32.mrb[0].mxu0
      %v1299 = vadd.f32 0.0, %v1298
      %v1300 = vpop.f32.mrb[0].mxu0
      %v1301 = vadd.f32 0.0, %v1300
      %v1302 = vpop.f32.mrb[0].mxu0
      %v1303 = vadd.f32 0.0, %v1302
      %1304 = vmatprep.mubr.bf16.mxu0 %v456
      %1305 = vmatmul.mubr.bf16.gmra.mrb[0].mxu0 %v455
      %v1306 = vpop.f32.mrb[0].mxu0
      %v1307 = vadd.f32 0.0, %v1306
      %v1308 = vpop.f32.mrb[0].mxu0
      %v1309 = vadd.f32 0.0, %v1308
      %v1310 = vpop.f32.mrb[0].mxu0
      %v1311 = vadd.f32 0.0, %v1310
      %v1312 = vpop.f32.mrb[0].mxu0
      %v1313 = vadd.f32 0.0, %v1312
      %1314 = vmatprep.mubr.bf16.mxu0 %v466
      %1315 = vmatmul.mubr.bf16.gmra.mrb[0].mxu0 %v465
      %v1316 = vpop.f32.mrb[0].mxu0
      %v1317 = vadd.f32 0.0, %v1316
      %v1318 = vpop.f32.mrb[0].mxu0
      %v1319 = vadd.f32 0.0, %v1318
      %v1320 = vpop.f32.mrb[0].mxu0
      %v1321 = vpop.f32.mrb[0].mxu0
      %1322 = vdwg.mxu0
      %1323 = vmatprep.subr.bf16.mxu0 %v985
      %1324 = vmatpush1.bf16.msra.mxu0 %v984
      %1325 = vmatprep.subr.bf16.mxu0 %v987
      %1326 = vmatpush1.bf16.msra.mxu0 %v986
      %1327 = vmatprep.subr.bf16.mxu0 %v989
      %1328 = vmatpush1.bf16.msra.mxu0 %v988
      %1329 = vmatprep.subr.bf16.mxu0 %v991
      %1330 = vmatpush1.bf16.msra.mxu0 %v990
      %1331 = vmatprep.subr.bf16.mxu0 %v993
      %1332 = vmatpush1.bf16.msra.mxu0 %v992
      %1333 = vmatprep.subr.bf16.mxu0 %v995
      %1334 = vmatpush1.bf16.msra.mxu0 %v994
      %1335 = vmatprep.subr.bf16.mxu0 %v997
      %1336 = vmatpush1.bf16.msra.mxu0 %v996
      %1337 = vmatprep.subr.bf16.mxu0 %v999
      %1338 = vmatpush1.bf16.msra.mxu0 %v998
      %1339 = vmatprep.subr.bf16.mxu0 %v1001
      %1340 = vmatpush1.bf16.msra.mxu0 %v1000
      %1341 = vmatprep.subr.bf16.mxu0 %v1003
      %1342 = vmatpush1.bf16.msra.mxu0 %v1002
      %1343 = vmatprep.subr.bf16.mxu0 %v1005
      %1344 = vmatpush1.bf16.msra.mxu0 %v1004
      %1345 = vmatprep.subr.bf16.mxu0 %v1007
      %1346 = vmatpush1.bf16.msra.mxu0 %v1006
      %1347 = vmatprep.subr.bf16.mxu0 %v1009
      %1348 = vmatpush1.bf16.msra.mxu0 %v1008
      %1349 = vmatprep.subr.bf16.mxu0 %v1011
      %1350 = vmatpush1.bf16.msra.mxu0 %v1010
      %1351 = vmatprep.subr.bf16.mxu0 %v1013
      %1352 = vmatpush1.bf16.msra.mxu0 %v1012
      %1353 = vmatprep.subr.bf16.mxu0 %v1015
      %1354 = vmatpush1.bf16.msra.mxu0 %v1014
      %1355 = vmatprep.mubr.bf16.mxu0 %v448
      %1356 = vmatmul.mubr.bf16.gmra.mrb[0].mxu0 %v447
      %v1357 = vpop.f32.mrb[0].mxu0
      %v1358 = vadd.f32 %v1297, %v1357
      %v1359 = vpop.f32.mrb[0].mxu0
      %v1360 = vadd.f32 %v1299, %v1359
      %v1361 = vpop.f32.mrb[0].mxu0
      %v1362 = vadd.f32 %v1301, %v1361
      %v1363 = vpop.f32.mrb[0].mxu0
      %v1364 = vadd.f32 %v1303, %v1363
      %1365 = vmatprep.mubr.bf16.mxu0 %v458
      %1366 = vmatmul.mubr.bf16.gmra.mrb[0].mxu0 %v457
      %v1367 = vpop.f32.mrb[0].mxu0
      %v1368 = vadd.f32 %v1307, %v1367
      %v1369 = vpop.f32.mrb[0].mxu0
      %v1370 = vadd.f32 %v1309, %v1369
      %v1371 = vpop.f32.mrb[0].mxu0
      %v1372 = vadd.f32 %v1311, %v1371
      %v1373 = vpop.f32.mrb[0].mxu0
      %v1374 = vadd.f32 %v1313, %v1373
      %1375 = vmatprep.mubr.bf16.mxu0 %v468
      %1376 = vmatmul.mubr.bf16.gmra.mrb[0].mxu0 %v467
      %v1377 = vpop.f32.mrb[0].mxu0
      %v1378 = vadd.f32 %v1317, %v1377
      %v1379 = vpop.f32.mrb[0].mxu0
      %v1380 = vadd.f32 %v1319, %v1379
      %v1381 = vpop.f32.mrb[0].mxu0
      %v1382 = vpop.f32.mrb[0].mxu0
      %1383 = vdwg.mxu0
      %1384 = vmatprep.subr.bf16.mxu0 %v1017
      %1385 = vmatpush1.bf16.msra.mxu0 %v1016
      %1386 = vmatprep.subr.bf16.mxu0 %v1019
      %1387 = vmatpush1.bf16.msra.mxu0 %v1018
      %1388 = vmatprep.subr.bf16.mxu0 %v1021
      %1389 = vmatpush1.bf16.msra.mxu0 %v1020
      %1390 = vmatprep.subr.bf16.mxu0 %v1023
      %1391 = vmatpush1.bf16.msra.mxu0 %v1022
      %1392 = vmatprep.subr.bf16.mxu0 %v1025
      %1393 = vmatpush1.bf16.msra.mxu0 %v1024
      %1394 = vmatprep.subr.bf16.mxu0 %v1027
      %1395 = vmatpush1.bf16.msra.mxu0 %v1026
      %1396 = vmatprep.subr.bf16.mxu0 %v1029
      %1397 = vmatpush1.bf16.msra.mxu0 %v1028
      %1398 = vmatprep.subr.bf16.mxu0 %v1031
      %1399 = vmatpush1.bf16.msra.mxu0 %v1030
      %1400 = vmatprep.subr.bf16.mxu0 %v1033
      %1401 = vmatpush1.bf16.msra.mxu0 %v1032
      %1402 = vmatprep.subr.bf16.mxu0 %v1035
      %1403 = vmatpush1.bf16.msra.mxu0 %v1034
      %1404 = vmatprep.subr.bf16.mxu0 %v1037
      %1405 = vmatpush1.bf16.msra.mxu0 %v1036
      %1406 = vmatprep.subr.bf16.mxu0 %v1039
      %1407 = vmatpush1.bf16.msra.mxu0 %v1038
      %1408 = vmatprep.subr.bf16.mxu0 %v1041
      %1409 = vmatpush1.bf16.msra.mxu0 %v1040
      %1410 = vmatprep.subr.bf16.mxu0 %v1043
      %1411 = vmatpush1.bf16.msra.mxu0 %v1042
      %1412 = vmatprep.subr.bf16.mxu0 %v1045
      %1413 = vmatpush1.bf16.msra.mxu0 %v1044
      %1414 = vmatprep.subr.bf16.mxu0 %v1047
      %1415 = vmatpush1.bf16.msra.mxu0 %v1046
      %1416 = vmatprep.mubr.bf16.mxu0 %v450
      %1417 = vmatmul.mubr.bf16.gmra.mrb[0].mxu0 %v449
      %v1418 = vpop.f32.mrb[0].mxu0
      %v1419 = vadd.f32 %v1358, %v1418
      %v1420 = vpop.f32.mrb[0].mxu0
      %v1421 = vadd.f32 %v1360, %v1420
      %v1422 = vpop.f32.mrb[0].mxu0
      %v1423 = vadd.f32 %v1362, %v1422
      %v1424 = vpop.f32.mrb[0].mxu0
      %v1425 = vadd.f32 %v1364, %v1424
      %1426 = vmatprep.mubr.bf16.mxu0 %v460
      %1427 = vmatmul.mubr.bf16.gmra.mrb[0].mxu0 %v459
      %v1428 = vpop.f32.mrb[0].mxu0
      %v1429 = vadd.f32 %v1368, %v1428
      %v1430 = vpop.f32.mrb[0].mxu0
      %v1431 = vadd.f32 %v1370, %v1430
      %v1432 = vpop.f32.mrb[0].mxu0
      %v1433 = vadd.f32 %v1372, %v1432
      %v1434 = vpop.f32.mrb[0].mxu0
      %v1435 = vadd.f32 %v1374, %v1434
      %1436 = vmatprep.mubr.bf16.mxu0 %v470
      %1437 = vmatmul.mubr.bf16.gmra.mrb[0].mxu0 %v469
      %v1438 = vpop.f32.mrb[0].mxu0
      %v1439 = vadd.f32 %v1378, %v1438
      %v1440 = vpop.f32.mrb[0].mxu0
      %v1441 = vadd.f32 %v1380, %v1440
      %v1442 = vpop.f32.mrb[0].mxu0
      %v1443 = vpop.f32.mrb[0].mxu0
      %1444 = vdwg.mxu0
      %1445 = vmatprep.subr.bf16.mxu0 %v1049
      %1446 = vmatpush1.bf16.msra.mxu0 %v1048
      %1447 = vmatprep.subr.bf16.mxu0 %v1051
      %1448 = vmatpush1.bf16.msra.mxu0 %v1050
      %1449 = vmatprep.subr.bf16.mxu0 %v1053
      %1450 = vmatpush1.bf16.msra.mxu0 %v1052
      %1451 = vmatprep.subr.bf16.mxu0 %v1055
      %1452 = vmatpush1.bf16.msra.mxu0 %v1054
      %1453 = vmatprep.subr.bf16.mxu0 %v1057
      %1454 = vmatpush1.bf16.msra.mxu0 %v1056
      %1455 = vmatprep.subr.bf16.mxu0 %v1059
      %1456 = vmatpush1.bf16.msra.mxu0 %v1058
      %1457 = vmatprep.subr.bf16.mxu0 %v1061
      %1458 = vmatpush1.bf16.msra.mxu0 %v1060
      %1459 = vmatprep.subr.bf16.mxu0 %v1063
      %1460 = vmatpush1.bf16.msra.mxu0 %v1062
      %1461 = vmatprep.subr.bf16.mxu0 %v1065
      %1462 = vmatpush1.bf16.msra.mxu0 %v1064
      %1463 = vmatprep.subr.bf16.mxu0 %v1067
      %1464 = vmatpush1.bf16.msra.mxu0 %v1066
      %1465 = vmatprep.subr.bf16.mxu0 %v1069
      %1466 = vmatpush1.bf16.msra.mxu0 %v1068
      %1467 = vmatprep.subr.bf16.mxu0 %v1071
      %1468 = vmatpush1.bf16.msra.mxu0 %v1070
      %1469 = vmatprep.subr.bf16.mxu0 %v1073
      %1470 = vmatpush1.bf16.msra.mxu0 %v1072
      %1471 = vmatprep.subr.bf16.mxu0 %v1075
      %1472 = vmatpush1.bf16.msra.mxu0 %v1074
      %1473 = vmatprep.subr.bf16.mxu0 %v1077
      %1474 = vmatpush1.bf16.msra.mxu0 %v1076
      %1475 = vmatprep.subr.bf16.mxu0 %v1079
      %1476 = vmatpush1.bf16.msra.mxu0 %v1078
      %1477 = vmatprep.mubr.bf16.mxu0 %v452
      %1478 = vmatmul.mubr.bf16.gmra.mrb[0].mxu0 %v451
      %v1479 = vpop.f32.mrb[0].mxu0
      %v1480 = vadd.f32 %v1419, %v1479
      %v1481 = vpop.f32.mrb[0].mxu0
      %v1482 = vadd.f32 %v1421, %v1481
      %v1483 = vpop.f32.mrb[0].mxu0
      %v1484 = vadd.f32 %v1423, %v1483
      %v1485 = vpop.f32.mrb[0].mxu0
      %v1486 = vadd.f32 %v1425, %v1485
      %1487 = vmatprep.mubr.bf16.mxu0 %v462
      %1488 = vmatmul.mubr.bf16.gmra.mrb[0].mxu0 %v461
      %v1489 = vpop.f32.mrb[0].mxu0
      %v1490 = vadd.f32 %v1429, %v1489
      %v1491 = vpop.f32.mrb[0].mxu0
      %v1492 = vadd.f32 %v1431, %v1491
      %v1493 = vpop.f32.mrb[0].mxu0
      %v1494 = vadd.f32 %v1433, %v1493
      %v1495 = vpop.f32.mrb[0].mxu0
      %v1496 = vadd.f32 %v1435, %v1495
      %1497 = vmatprep.mubr.bf16.mxu0 %v472
      %1498 = vmatmul.mubr.bf16.gmra.mrb[0].mxu0 %v471
      %v1499 = vpop.f32.mrb[0].mxu0
      %v1500 = vadd.f32 %v1439, %v1499
      %v1501 = vpop.f32.mrb[0].mxu0
      %v1502 = vadd.f32 %v1441, %v1501
      %v1503 = vpop.f32.mrb[0].mxu0
      %v1504 = vpop.f32.mrb[0].mxu0
      %1505 = vdwg.mxu0
      %1506 = vmatprep.subr.bf16.mxu0 %v1081
      %1507 = vmatpush1.bf16.msra.mxu0 %v1080
      %1508 = vmatprep.subr.bf16.mxu0 %v1083
      %1509 = vmatpush1.bf16.msra.mxu0 %v1082
      %1510 = vmatprep.subr.bf16.mxu0 %v1085
      %1511 = vmatpush1.bf16.msra.mxu0 %v1084
      %1512 = vmatprep.subr.bf16.mxu0 %v1087
      %1513 = vmatpush1.bf16.msra.mxu0 %v1086
      %1514 = vmatprep.subr.bf16.mxu0 %v1089
      %1515 = vmatpush1.bf16.msra.mxu0 %v1088
      %1516 = vmatprep.subr.bf16.mxu0 %v1091
      %1517 = vmatpush1.bf16.msra.mxu0 %v1090
      %1518 = vmatprep.subr.bf16.mxu0 %v1093
      %1519 = vmatpush1.bf16.msra.mxu0 %v1092
      %1520 = vmatprep.subr.bf16.mxu0 %v1095
      %1521 = vmatpush1.bf16.msra.mxu0 %v1094
      %1522 = vmatprep.subr.bf16.mxu0 %v1097
      %1523 = vmatpush1.bf16.msra.mxu0 %v1096
      %1524 = vmatprep.subr.bf16.mxu0 %v1099
      %1525 = vmatpush1.bf16.msra.mxu0 %v1098
      %1526 = vmatprep.subr.bf16.mxu0 %v1101
      %1527 = vmatpush1.bf16.msra.mxu0 %v1100
      %1528 = vmatprep.subr.bf16.mxu0 0
      %1529 = vmatpush1.bf16.msra.mxu0 0
      %1530 = vmatprep.subr.bf16.mxu0 0
      %1531 = vmatpush1.bf16.msra.mxu0 0
      %1532 = vmatprep.subr.bf16.mxu0 0
      %1533 = vmatpush1.bf16.msra.mxu0 0
      %1534 = vmatprep.subr.bf16.mxu0 0
      %1535 = vmatpush1.bf16.msra.mxu0 0
      %1536 = vmatprep.subr.bf16.mxu0 0
      %1537 = vmatpush1.bf16.msra.mxu0 0
      %1538 = vmatprep.mubr.bf16.mxu0 %v1254
      %1539 = vmatmul.mubr.bf16.gmra.mrb[0].mxu0 %v453
      %v1540 = vpop.f32.mrb[0].mxu0
      %v1541 = vadd.f32 %v1480, %v1540
      %v1542 = vpop.f32.mrb[0].mxu0
      %v1543 = vadd.f32 %v1482, %v1542
      %v1544 = vpop.f32.mrb[0].mxu0
      %v1545 = vadd.f32 %v1484, %v1544
      %v1546 = vpop.f32.mrb[0].mxu0
      %v1547 = vadd.f32 %v1486, %v1546
      %1548 = vmatprep.mubr.bf16.mxu0 %v1257
      %1549 = vmatmul.mubr.bf16.gmra.mrb[0].mxu0 %v463
      %v1550 = vpop.f32.mrb[0].mxu0
      %v1551 = vadd.f32 %v1490, %v1550
      %v1552 = vpop.f32.mrb[0].mxu0
      %v1553 = vadd.f32 %v1492, %v1552
      %v1554 = vpop.f32.mrb[0].mxu0
      %v1555 = vadd.f32 %v1494, %v1554
      %v1556 = vpop.f32.mrb[0].mxu0
      %v1557 = vadd.f32 %v1496, %v1556
      %1558 = vmatprep.mubr.bf16.mxu0 %v1260
      %1559 = vmatmul.mubr.bf16.gmra.mrb[0].mxu0 %v473
      %v1560 = vpop.f32.mrb[0].mxu0
      %v1561 = vadd.f32 %v1500, %v1560
      %v1562 = vpop.f32.mrb[0].mxu0
      %v1563 = vadd.f32 %v1502, %v1562
      %v1564 = vpop.f32.mrb[0].mxu0
      %v1565 = vpop.f32.mrb[0].mxu0
      %1566 = vdwg.mxu0
      %1567 = vst [vmem:[%s192] sm:$0xff] %v1541
      %vm1568 = vcmask 556032
      %1569 = vst.msk [vmem:[%s192 + $0x8] sm:$0xff] %vm1568, %v1543
      %1570 = vst [vmem:[%s192 + $0x10] sm:$0xff] %v1545
      %1571 = vst.msk [vmem:[%s192 + $0x18] sm:$0xff] %vm1568, %v1547
      %1572 = vst [vmem:[%s192 + $0x20] sm:$0xff] %v1551
      %1573 = vst.msk [vmem:[%s192 + $0x28] sm:$0xff] %vm1568, %v1553
      %1574 = vst [vmem:[%s192 + $0x30] sm:$0xff] %v1555
      %1575 = vst.msk [vmem:[%s192 + $0x38] sm:$0xff] %vm1568, %v1557
      %1576 = vst [vmem:[%s192 + $0x40] sm:$0xff] %v1561
      %1577 = vst.msk [vmem:[%s192 + $0x48] sm:$0xff] %vm1568, %v1563
      %s1578 = smul.u32 5, %s18
      %p1579 = scmp.lt.s32.totalorder %s17, 0
      %s1580 = scalar_select %p1579, %s17, 0
      %p1581 = scmp.lt.s32.totalorder %s1578, 24
      %s1582 = scalar_select %p1581, %s1578, 24
      %s1583 = smul.addr %s1582, 2
      %s1584 = smul.addr %s1580, 50
      %s1585 = sadd.s32 %s1583, %s1584
      %s1586 = smul.addr %s1585, 8
      %s1587 = scalar_lea.vmem %s2, %s1586
      // Predicated region
      $region29: #{tpu_custom_call.1} parent=27 // pred_check
        %p1588 = pneg %p97
      $region30: #{tpu_custom_call.1} parent=27 // pred_check_branch
        %1590 = sbr.rel (%p1588) target = $region32
      $region31: #{tpu_custom_call.1} parent=27 // pred_region
        %s1591 = smul.u32 5, %s18
      $region32: #{tpu_custom_call.1} parent=27 // pred_fallthru
        _
    $region28: #{tpu_custom_call.1} parent=5 // pred_fallthru
      _
    %p1592 = scmp.le.s32.totalorder 2, %s8
    // Predicated region
    $region33: #{tpu_custom_call.1} parent=5 // pred_check
      %p1593 = pneg %p1592
    $region34: #{tpu_custom_call.1} parent=5 // pred_check_branch
      %1595 = sbr.rel (%p1593) target = $region36
    $region35: #{tpu_custom_call.1} parent=5 // pred_region
      %s1596 = ssub.s32 %s8, 2
      // Predicated region
      $region37: #{tpu_custom_call.1} parent=35 // pred_check
        %p1597 = pneg %p103
      $region38: #{tpu_custom_call.1} parent=35 // pred_check_branch
        %1599 = sbr.rel (%p1597) target = $region40
      $region39: #{tpu_custom_call.1} parent=35 // pred_region
        %s1600 = smul.u32 5, %s20
        %p1601 = scmp.lt.s32.totalorder %s19, 0
        %s1602 = scalar_select %p1601, %s19, 0
        %p1603 = scmp.lt.s32.totalorder %s1600, 24
        %s1604 = scalar_select %p1603, %s1600, 24
        %s1605 = smul.addr %s1604, 2
        %s1606 = smul.addr %s1602, 50
        %s1607 = sadd.s32 %s1605, %s1606
        %s1608 = smul.addr %s1607, 8
        %s1609 = scalar_lea.vmem %s2, %s1608
      $region40: #{tpu_custom_call.1} parent=35 // pred_fallthru
        _
    $region36: #{tpu_custom_call.1} parent=5 // pred_fallthru
      _
  $region6: #{tpu_custom_call.1} parent=0 // loop_footer
    %s12 = sadd.s32 1, %s8
  $region7: #{tpu_custom_call.1} parent=0 // loop_footer_branch
    %7 = sbr.rel target = $region3
  $region8: #{tpu_custom_call.1} parent=0 // loop_exit
    _

</llo_original>
